<compile_context>
chip_gen: v6e
topology: v6e:2x2x1
jax: 0.10.0
libtpu: 0.0.40
codegen_flags: <defaults>
</compile_context>

<pallas_src>
import functools
import math

import jax
import jax.numpy as jnp
from jax import lax
from jax.experimental import pallas as pl
from jax.experimental.pallas import tpu as pltpu


def _round_up(a, b):
    return ((a + b - 1) // b) * b


# ---------------------------------------------------------------------------
# Pass 1: BatchNorm batch statistics (per-channel sum and sum-of-squares).
# Grid over lane tiles; (C, 1) outputs stay resident across the reduction
# axis and are initialised / accumulated with pl.when.  Padding lanes are
# exactly zero in the slab, so no masking is needed for the sums.
# ---------------------------------------------------------------------------
def bn_stats_kernel(x_ref, sum_ref, sq_ref):
    @pl.when(pl.program_id(0) == 0)
    def _():
        sum_ref[...] = jnp.zeros_like(sum_ref)
        sq_ref[...] = jnp.zeros_like(sq_ref)

    x = x_ref[...].astype(jnp.float32)                 # (C, TILE_L)
    sum_ref[...] += jnp.sum(x, axis=1, keepdims=True)  # (C, 1)
    sq_ref[...] += jnp.sum(x * x, axis=1, keepdims=True)


# ---------------------------------------------------------------------------
# Pass 2: (BN-folded) 1x1 conv + GLU + ConvTranspose1d + ReLU on a lane tile.
# ---------------------------------------------------------------------------
def decoder_apply_kernel(x_ref, cwl_ref, cbl_ref, cwg_ref, cbg_ref,
                         tw_ref, tb_ref, o_ref, *, l_valid, l_pad):
    x = x_ref[...]                                     # (C, TILE_L), f32/bf16

    # 1x1 conv with BatchNorm affine pre-folded into the weights, split into
    # the two GLU halves (avoids an odd-sublane slice), f32 accumulation.
    lin = jnp.dot(cwl_ref[...], x, preferred_element_type=jnp.float32) + cbl_ref[...]
    gate = jnp.dot(cwg_ref[...], x, preferred_element_type=jnp.float32) + cbg_ref[...]
    z = lin * jax.nn.sigmoid(gate)                     # (C, TILE_L) f32 (GLU)

    # Zero the per-batch padding lanes; mask generated in-kernel (iota), no
    # extra HBM stream.  TILE_L is a multiple of L_pad, so lane % L_pad is the
    # block-local position for every tile.
    lane = lax.broadcasted_iota(jnp.int32, (1, x.shape[1]), 1)
    if (l_pad & (l_pad - 1)) == 0:                     # power-of-two block
        lane_in_block = lane & (l_pad - 1)
    else:
        lane_in_block = lane % l_pad
    z = jnp.where(lane_in_block < l_valid, z, 0.0)
    z = z.astype(tw_ref.dtype)                         # MXU operand dtype

    # ConvTranspose1d (stride=1): per-tap matmul + XLU roll overlap-add.
    # Only a (C_out, TILE_L) accumulator is live (no K-stacked intermediate).
    # Correctness of the roll: L_pad >= L + K - 1 and z == 0 on padding lanes,
    # so lanes wrapped/rolled across block or tile boundaries are zeros.
    k_taps = tw_ref.shape[0]
    acc = jnp.dot(tw_ref[0], z, preferred_element_type=jnp.float32)
    for k in range(1, k_taps):                         # K is small and static
        tap = jnp.dot(tw_ref[k], z, preferred_element_type=jnp.float32)
        acc = acc + pltpu.roll(tap, k, axis=1)

    o_ref[...] = jnp.maximum(acc + tb_ref[...], 0.0).astype(o_ref.dtype)


def decoder_layer(x, bn_w, bn_b, conv_w, conv_b, tconv_w, tconv_b, *,
                  compute_dtype=jnp.float32, target_tile_lanes=512):
    """DecoderLayer forward.  PyTorch-shaped parameters; layout plumbing here.

    x       : (N, C, L)
    bn_w/bn_b: (C,)
    conv_w  : (2C, C, 1, 1),  conv_b: (2C,)
    tconv_w : (C, C_out, K),  tconv_b: (C_out,)
    returns : (N, C_out, L + K - 1) float32
    """
    N, C, L = x.shape
    C2 = conv_w.shape[0]
    assert C2 == 2 * C
    _, C_out, K = tconv_w.shape
    L_out = L + K - 1
    eps = 1e-5

    # ---- lane layout: per-batch blocks of L_pad lanes, tiles of TILE_L ----
    if L_out <= 128:
        L_pad = 1 << (L_out - 1).bit_length()          # next pow2 >= L_out
    else:
        L_pad = _round_up(L_out, 128)
    assert L_pad >= L_out                              # roll overlap-add safety
    tile_base = L_pad * 128 // math.gcd(L_pad, 128)    # block- and lane-aligned
    total0 = _round_up(N * L_pad, tile_base)
    TILE_L = min(_round_up(target_tile_lanes, tile_base), total0)
    total = _round_up(total0, TILE_L)                  # lane count, % TILE_L == 0
    N_pad = total // L_pad
    grid_l = total // TILE_L

    # ---- layout plumbing (plain XLA, outside the kernels) ----
    x_slab = (jnp.zeros((C, N_pad, L_pad), compute_dtype)
              .at[:, :N, :L].set(jnp.transpose(x, (1, 0, 2)).astype(compute_dtype))
              .reshape(C, total))

    cparams_stats = pltpu.CompilerParams(
        dimension_semantics=("arbitrary",), vmem_limit_bytes=64 * 1024 * 1024)
    cparams_apply = pltpu.CompilerParams(
        dimension_semantics=("parallel",), vmem_limit_bytes=64 * 1024 * 1024)

    # ---- pass 1: global per-channel batch statistics ----
    x_sum, x_sq = pl.pallas_call(
        bn_stats_kernel,
        grid=(grid_l,),
        in_specs=[pl.BlockSpec((C, TILE_L), lambda l: (0, l))],
        out_specs=[pl.BlockSpec((C, 1), lambda l: (0, 0)),
                   pl.BlockSpec((C, 1), lambda l: (0, 0))],
        out_shape=[jax.ShapeDtypeStruct((C, 1), jnp.float32),
                   jax.ShapeDtypeStruct((C, 1), jnp.float32)],
        compiler_params=cparams_stats,
    )(x_slab)

    # ---- fold BN (training-mode batch stats) into the 1x1 conv params ----
    inv_cnt = 1.0 / float(N * L)                       # Python float, no divides
    mean = (x_sum * inv_cnt)[:, 0]                     # (C,)
    var = (x_sq * inv_cnt)[:, 0] - mean * mean         # biased batch variance
    a = bn_w.astype(jnp.float32) * lax.rsqrt(var + eps)   # per-channel scale
    b = bn_b.astype(jnp.float32) - mean * a                # per-channel shift

    cw = conv_w.reshape(C2, C).astype(jnp.float32)
    cw_eff = cw * a[None, :]                           # BN scale folded in
    cb_eff = cw @ b + conv_b.astype(jnp.float32)       # BN shift folded in

    cwl = cw_eff[:C].astype(compute_dtype)             # GLU value half
    cwg = cw_eff[C:].astype(compute_dtype)             # GLU gate half
    cbl = cb_eff[:C].reshape(C, 1)
    cbg = cb_eff[C:].reshape(C, 1)

    # ConvTranspose1d weight: (C_in, C_out, K) -> (K, C_out, C_in)
    tw = jnp.transpose(tconv_w, (2, 1, 0)).astype(compute_dtype)
    tb = tconv_b.reshape(C_out, 1).astype(jnp.float32)

    # ---- pass 2: lane-tiled, pipelined apply kernel ----
    kernel = functools.partial(decoder_apply_kernel, l_valid=L, l_pad=L_pad)
    out_slab = pl.pallas_call(
        kernel,
        grid=(grid_l,),
        in_specs=[
            pl.BlockSpec((C, TILE_L), lambda l: (0, l)),
            pl.BlockSpec((C, C), lambda l: (0, 0)),
            pl.BlockSpec((C, 1), lambda l: (0, 0)),
            pl.BlockSpec((C, C), lambda l: (0, 0)),
            pl.BlockSpec((C, 1), lambda l: (0, 0)),
            pl.BlockSpec((K, C_out, C), lambda l: (0, 0, 0)),
            pl.BlockSpec((C_out, 1), lambda l: (0, 0)),
        ],
        out_specs=pl.BlockSpec((C_out, TILE_L), lambda l: (0, l)),
        out_shape=jax.ShapeDtypeStruct((C_out, total), jnp.float32),
        compiler_params=cparams_apply,
    )(x_slab, cwl, cbl, cwg, cbg, tw, tb)

    # un-flatten + strip lane / phantom-batch padding
    out = out_slab.reshape(C_out, N_pad, L_pad)[:, :N, :L_out]
    return jnp.transpose(out, (1, 0, 2))


def decoder_layer_reference(x, bn_w, bn_b, conv_w, conv_b, tconv_w, tconv_b):
    """Pure-JAX reference mirroring the PyTorch forward (training-mode BN)."""
    eps = 1e-5
    N, C, L = x.shape
    _, C_out, K = tconv_w.shape

    mean = x.mean(axis=(0, 2), keepdims=True)
    var = ((x - mean) ** 2).mean(axis=(0, 2), keepdims=True)
    xn = (x - mean) / jnp.sqrt(var + eps)
    xn = xn * bn_w[None, :, None] + bn_b[None, :, None]

    w2 = conv_w.reshape(2 * C, C)
    y = jnp.einsum('oc,ncl->nol', w2, xn) + conv_b[None, :, None]
    z = y[:, :C] * jax.nn.sigmoid(y[:, C:])

    out = jnp.zeros((N, C_out, L + K - 1), jnp.float32) + tconv_b[None, :, None]
    for k in range(K):
        out = out.at[:, :, k:k + L].add(jnp.einsum('co,ncl->nol', tconv_w[:, :, k], z))
    return jnp.maximum(out, 0.0)


if __name__ == "__main__":
    # Small deterministic problem: batch=2, in_channels=4, out_channels=8,
    # seq length=16, transposed-conv kernel_size=3.
    N, C_in, C_out, L, K = 2, 4, 8, 16, 3

    key = jax.random.PRNGKey(0)
    k0, k1, k2, k3, k4, k5, k6 = jax.random.split(key, 7)

    x = jax.random.normal(k0, (N, C_in, L), jnp.float32)

    # Parameters in PyTorch-native shapes:
    bn_w = 1.0 + 0.1 * jax.random.normal(k1, (C_in,), jnp.float32)
    bn_b = 0.1 * jax.random.normal(k2, (C_in,), jnp.float32)
    conv_w = jax.random.normal(k3, (2 * C_in, C_in, 1, 1), jnp.float32) / jnp.sqrt(C_in)
    conv_b = 0.1 * jax.random.normal(k4, (2 * C_in,), jnp.float32)
    tconv_w = jax.random.normal(k5, (C_in, C_out, K), jnp.float32) / jnp.sqrt(C_in * K)
    tconv_b = 0.1 * jax.random.normal(k6, (C_out,), jnp.float32)

    ref = jax.block_until_ready(
        decoder_layer_reference(x, bn_w, bn_b, conv_w, conv_b, tconv_w, tconv_b))

    # f32 path: tight check against the reference.
    out_f32 = jax.block_until_ready(
        decoder_layer(x, bn_w, bn_b, conv_w, conv_b, tconv_w, tconv_b,
                      compute_dtype=jnp.float32))
    assert out_f32.shape == (N, C_out, L + K - 1), out_f32.shape
    err_f32 = float(jnp.max(jnp.abs(out_f32 - ref)))
    assert err_f32 < 1e-4, f"f32 max abs err = {err_f32}"

    # bf16 MXU-operand path (v6e/v7x recommendation): looser tolerance.
    out_bf16 = jax.block_until_ready(
        decoder_layer(x, bn_w, bn_b, conv_w, conv_b, tconv_w, tconv_b,
                      compute_dtype=jnp.bfloat16))
    assert out_bf16.shape == (N, C_out, L + K - 1), out_bf16.shape
    err_bf16 = float(jnp.max(jnp.abs(out_bf16 - ref)))
    assert err_bf16 < 1e-1, f"bf16 max abs err = {err_bf16}"

    print("KERNEL_OK")
</pallas_src>

<mosaic_0001>
module attributes {stable_mosaic.version = 11 : i64} {
  func.func @bn_stats_kernel(%arg0: i32, %arg1: memref<4x128xf32, #tpu.memory_space<vmem>>, %arg2: memref<4x1xf32, #tpu.memory_space<vmem>>, %arg3: memref<4x1xf32, #tpu.memory_space<vmem>>) attributes {dimension_semantics = [#tpu.dimension_semantics<arbitrary>], iteration_bounds = array<i64: 1>, scalar_prefetch = 0 : i64, scratch_operands = 0 : i64, tpu.core_type = #tpu.core_type<tc>, window_params = [{transform_indices = @transform_0, window_bounds = array<i64: 4, 128>}, {pipeline_mode = #tpu.pipeline_mode<synchronous>, transform_indices = @transform_1, window_bounds = array<i64: 4, 1>}, {pipeline_mode = #tpu.pipeline_mode<synchronous>, transform_indices = @transform_2, window_bounds = array<i64: 4, 1>}]} {
    %c0_i32 = arith.constant 0 : i32
    %0 = arith.cmpi eq, %arg0, %c0_i32 : i32
    %1 = arith.extui %0 : i1 to i32
    %c0_i32_0 = arith.constant 0 : i32
    %2 = arith.cmpi ne, %1, %c0_i32_0 : i32
    scf.if %2 {
      %cst_11 = arith.constant 0.000000e+00 : f32
      %15 = vector.broadcast %cst_11 : f32 to vector<4x1xf32>
      %c0_12 = arith.constant 0 : index
      %c0_13 = arith.constant 0 : index
      %16 = vector.load %arg2[%c0_12, %c0_13] : memref<4x1xf32, #tpu.memory_space<vmem>>, vector<4x1xf32>
      tpu.vector_store %arg2[%c0_12, %c0_13], %15 {strides = array<i32>} : memref<4x1xf32, #tpu.memory_space<vmem>>, vector<4x1xf32>,
      %cst_14 = arith.constant 0.000000e+00 : f32
      %17 = vector.broadcast %cst_14 : f32 to vector<4x1xf32>
      %c0_15 = arith.constant 0 : index
      %c0_16 = arith.constant 0 : index
      %18 = vector.load %arg3[%c0_15, %c0_16] : memref<4x1xf32, #tpu.memory_space<vmem>>, vector<4x1xf32>
      tpu.vector_store %arg3[%c0_15, %c0_16], %17 {strides = array<i32>} : memref<4x1xf32, #tpu.memory_space<vmem>>, vector<4x1xf32>,
    } else {
    }
    %c0 = arith.constant 0 : index
    %c0_1 = arith.constant 0 : index
    %3 = vector.load %arg1[%c0, %c0_1] : memref<4x128xf32, #tpu.memory_space<vmem>>, vector<4x128xf32>
    %c0_2 = arith.constant 0 : index
    %c0_3 = arith.constant 0 : index
    %4 = vector.load %arg2[%c0_2, %c0_3] : memref<4x1xf32, #tpu.memory_space<vmem>>, vector<4x1xf32>
    %cst = arith.constant dense<0.000000e+00> : vector<4xf32>
    %5 = vector.multi_reduction <add>, %3, %cst [1] : vector<4x128xf32> to vector<4xf32>
    %6 = vector.shape_cast %5 : vector<4xf32> to vector<4x1xf32>
    %7 = arith.addf %4, %6 : vector<4x1xf32>
    %c0_4 = arith.constant 0 : index
    %c0_5 = arith.constant 0 : index
    %8 = vector.load %arg2[%c0_4, %c0_5] : memref<4x1xf32, #tpu.memory_space<vmem>>, vector<4x1xf32>
    tpu.vector_store %arg2[%c0_4, %c0_5], %7 {strides = array<i32>} : memref<4x1xf32, #tpu.memory_space<vmem>>, vector<4x1xf32>,
    %c0_6 = arith.constant 0 : index
    %c0_7 = arith.constant 0 : index
    %9 = vector.load %arg3[%c0_6, %c0_7] : memref<4x1xf32, #tpu.memory_space<vmem>>, vector<4x1xf32>
    %10 = arith.mulf %3, %3 : vector<4x128xf32>
    %cst_8 = arith.constant dense<0.000000e+00> : vector<4xf32>
    %11 = vector.multi_reduction <add>, %10, %cst_8 [1] : vector<4x128xf32> to vector<4xf32>
    %12 = vector.shape_cast %11 : vector<4xf32> to vector<4x1xf32>
    %13 = arith.addf %9, %12 : vector<4x1xf32>
    %c0_9 = arith.constant 0 : index
    %c0_10 = arith.constant 0 : index
    %14 = vector.load %arg3[%c0_9, %c0_10] : memref<4x1xf32, #tpu.memory_space<vmem>>, vector<4x1xf32>
    tpu.vector_store %arg3[%c0_9, %c0_10], %13 {strides = array<i32>} : memref<4x1xf32, #tpu.memory_space<vmem>>, vector<4x1xf32>,
    return
  }
  func.func @transform_0(%arg0: i32) -> (i32, i32) {
    %c0_i32 = arith.constant 0 : i32
    %c0_i32_0 = arith.constant 0 : i32
    return %c0_i32, %arg0 : i32, i32
  }
  func.func @transform_1(%arg0: i32) -> (i32, i32) {
    %c0_i32 = arith.constant 0 : i32
    %c0_i32_0 = arith.constant 0 : i32
    %c0_i32_1 = arith.constant 0 : i32
    return %c0_i32, %c0_i32_0 : i32, i32
  }
  func.func @transform_2(%arg0: i32) -> (i32, i32) {
    %c0_i32 = arith.constant 0 : i32
    %c0_i32_0 = arith.constant 0 : i32
    %c0_i32_1 = arith.constant 0 : i32
    return %c0_i32, %c0_i32_0 : i32, i32
  }
}

</mosaic_0001>

<llo_original>
// kernel: tpu_custom_call.1
$region0: #{tpu_custom_call.1}
  #allocation0 [shape = 'u32[]', space=smem, size = 0x4, offset = 0x4, fixed_abs, tag = 'smem constant byte address 0x4 - core index']
  #allocation1 [shape = 'u32[144,128]{1,0:T(1,128)}', space=vmem, size = 0x12000, scoped, tag = 'internal scratch']
  %s0 = inlined_call_operand.hbm [shape: f32[4,128], index: 0, kind: input, shape index: {}]
  %s1 = inlined_call_operand.vmem [shape: f32[4,1], index: 1, kind: output, shape index: {0}]
  %s2 = inlined_call_operand.vmem [shape: f32[4,1], index: 2, kind: output, shape index: {1}]
  %3 = xla_tuple %s1, %s2
  %s4 = sld [smem:[#allocation0]]
  $region30: #{tpu_custom_call.1} parent=0
    _
  %s6 = ssub.s32 1, %s4
  %s7 = scalar_select 0, %s6, %s4
  $region1: #{tpu_custom_call.1} parent=0
    #allocation2 [shape = 'u8[2048]{0}', space=vmem, size = 0x800, scoped, tag = 'input window, operand 0, single buffered']
    #allocation3 [shape = 's32[1]{0}', space=sflag, size = 0x4, scoped, tag = 'scoped memory for tpu_custom_call.1']
    %8 = vsyncpa [#allocation3], 0
    // Predicated region
    $region2: #{tpu_custom_call.1} parent=1 // pred_check
      _
    $region3: #{tpu_custom_call.1} parent=1 // pred_check_branch
      %10 = sbr.rel (0) target = $region5
    $region4: #{tpu_custom_call.1} parent=1 // pred_region
      %s12 = ssub.s32 64, 64
      %13 = vsyncadd [#allocation3], %s12
      %s15 = sshll.u32 [#allocation2], 4
      %s16 = int_to_ptr.vmem [resolvable:$true] %s15
      %18 = dma.hbm_to_vmem [thread:$0]  %s0, 64, %s16, [#allocation3]
    $region5: #{tpu_custom_call.1} parent=1 // pred_fallthru
      _
    // Predicated region
    $region6: #{tpu_custom_call.1} parent=1 // pred_check
      _
    $region7: #{tpu_custom_call.1} parent=1 // pred_check_branch
      %20 = sbr.rel (0) target = $region9
    $region8: #{tpu_custom_call.1} parent=1 // pred_region
      %21 = dma.done [#allocation3], 64
    $region9: #{tpu_custom_call.1} parent=1 // pred_fallthru
      _
    %p22 = scmp.eq.s32.totalorder 0, 0
    // Predicated region
    $region10: #{tpu_custom_call.1} parent=1 // pred_check
      %p23 = pneg %p22
    $region11: #{tpu_custom_call.1} parent=1 // pred_check_branch
      %25 = sbr.rel (%p23) target = $region13
    $region12: #{tpu_custom_call.1} parent=1 // pred_region
      %vm26 = vcmask 3072
      %27 = vst.msk [vmem:[%s1] sm:$0xf] %vm26, 0.0
      %28 = vst.msk [vmem:[%s2] sm:$0xf] %vm26, 0.0
    $region13: #{tpu_custom_call.1} parent=1 // pred_fallthru
      _
    %v29 = vld [vmem:[#allocation2] sm:$0xf]
    %v30 = vld [vmem:[%s1] sm:$0xf]
    %vm31 = vcmask 1043456
    %v32 = vsel %vm31, %v29, 0.0
    %33 = vadd.xlane.f32.xlu0 %v32
    %v34 = vpop.xlane.xlu0 %33
    %v35 = vadd.f32 %v30, %v34
    %vm36 = vcmask 3072
    %37 = vst.msk [vmem:[%s1] sm:$0xf] %vm36, %v35
    %v38 = vld [vmem:[%s2] sm:$0xf]
    %v39 = vmul.f32 %v29, %v29
    %v40 = vsel %vm31, %v39, 0.0
    %41 = vadd.xlane.f32.xlu0 %v40
    %v42 = vpop.xlane.xlu0 %41
    %v43 = vadd.f32 %v38, %v42
    %44 = vst.msk [vmem:[%s2] sm:$0xf] %vm36, %v43
    // Predicated region
    $region14: #{tpu_custom_call.1} parent=1 // pred_check
      _
    $region15: #{tpu_custom_call.1} parent=1 // pred_check_branch
      %46 = sbr.rel (0) target = $region17
    $region16: #{tpu_custom_call.1} parent=1 // pred_region
      _
    $region17: #{tpu_custom_call.1} parent=1 // pred_fallthru
      _
    // Predicated region
    $region18: #{tpu_custom_call.1} parent=1 // pred_check
      _
    $region19: #{tpu_custom_call.1} parent=1 // pred_check_branch
      %48 = sbr.rel (0) target = $region21
    $region20: #{tpu_custom_call.1} parent=1 // pred_region
      _
    $region21: #{tpu_custom_call.1} parent=1 // pred_fallthru
      _
    // Predicated region
    $region22: #{tpu_custom_call.1} parent=1 // pred_check
      _
    $region23: #{tpu_custom_call.1} parent=1 // pred_check_branch
      %50 = sbr.rel (0) target = $region25
    $region24: #{tpu_custom_call.1} parent=1 // pred_region
      _
    $region25: #{tpu_custom_call.1} parent=1 // pred_fallthru
      _
    // Predicated region
    $region26: #{tpu_custom_call.1} parent=1 // pred_check
      _
    $region27: #{tpu_custom_call.1} parent=1 // pred_check_branch
      %52 = sbr.rel (0) target = $region29
    $region28: #{tpu_custom_call.1} parent=1 // pred_region
      _
    $region29: #{tpu_custom_call.1} parent=1 // pred_fallthru
      _
    %53 = vsyncpa [#allocation3], 1

</llo_original>
